<compile_context>
chip_gen: v7x
topology: tpu7x:2x2x1
jax: 0.10.0
libtpu: 0.0.40
codegen_flags: <defaults>
</compile_context>

<pallas_src>
import functools
import math

import jax
import jax.numpy as jnp
from jax.experimental import pallas as pl
from jax.experimental.pallas import tpu as pltpu

_LANE = 128


# ----------------------------------------------------------------------------
# Parameter construction (plain JAX) -- deterministic, mirrors __init__.
# ----------------------------------------------------------------------------
def make_pos_encoding(D: int, length: int) -> jnp.ndarray:
    i = jnp.arange(D, dtype=jnp.float32)
    even = (jnp.arange(D) % 2) == 0
    freqs = jnp.where(
        even,
        10000.0 ** (-i / D),
        -(10000.0 ** (-(i - 1.0) / D)),
    )[:, None]                                                        # (D, 1)
    phases = jnp.where(even, 0.0, math.pi / 2.0)[:, None].astype(jnp.float32)
    pos = jnp.arange(length, dtype=jnp.float32)[None, :]              # (1, L)
    return jnp.sin(pos * freqs + phases)                              # (D, L)


# ----------------------------------------------------------------------------
# Small static helpers (all run at trace time on Python ints).
# ----------------------------------------------------------------------------
def _cdiv(a: int, b: int) -> int:
    return -(-a // b)


def _round_down(v: int, m: int) -> int:
    return (v // m) * m


def _largest_divisor_leq(n: int, cap: int) -> int:
    """Largest divisor of n that is <= cap (>= 1)."""
    cap = min(cap, n)
    if cap < 1:
        return 1
    best = 1
    i = 1
    while i * i <= n:
        if n % i == 0:
            lo, hi = i, n // i
            if lo <= cap and lo > best:
                best = lo
            if hi <= cap and hi > best:
                best = hi
        i += 1
    return best


def _pick_lane_block(extent: int, budget: int) -> int:
    """Lane-dim block: full extent, or a multiple of 128 (dividing if cheap)."""
    budget = max(_LANE, _round_down(budget, _LANE))
    if extent <= budget:
        return extent
    if extent % _LANE == 0:
        div = _LANE * _largest_divisor_leq(extent // _LANE, budget // _LANE)
        if 2 * div >= budget:        # dividing block close to budget -> take it
            return div
    return budget                    # lane-aligned blocks, ragged last tile


def _hw_config(dtype_bytes: int):
    """Per-generation block-element budget and vmem limit."""
    vmem_bytes = None
    try:
        info = pltpu.get_tpu_info()
        vmem_bytes = getattr(info, "vmem_capacity_bytes", None)
    except Exception:
        vmem_bytes = None
    if vmem_bytes is None:
        vmem_bytes = 64 * 1024 * 1024                    # conservative (v7x-sized)
    if vmem_bytes >= 100 * 1024 * 1024:                  # v5e / v6e: 128 MiB VMEM
        target_block_bytes = 8 * 1024 * 1024
        vmem_limit = 64 * 1024 * 1024
    else:                                                # v7x: 64 MiB VMEM
        target_block_bytes = 4 * 1024 * 1024
        vmem_limit = 40 * 1024 * 1024
    # ~6x block (double-buffered x-in, x-out, pe) must stay inside vmem_limit.
    cap_elems = min(target_block_bytes, vmem_limit // 8) // dtype_bytes
    cap_elems = max(cap_elems, 8 * _LANE)
    return cap_elems, vmem_limit


# ----------------------------------------------------------------------------
# Kernels: pure broadcast add (HBM-bandwidth bound).
# ----------------------------------------------------------------------------
def _add_flat_kernel(x_ref, pe_ref, o_ref):
    # x/o: (block_b, block_c); pe: (1, block_c) broadcasts over rows.
    o_ref[...] = x_ref[...] + pe_ref[...]


def _add_3d_kernel(x_ref, pe_ref, o_ref):
    # x/o: (1, D, block_l); pe: (D, block_l) broadcast over the batch dim.
    o_ref[...] = x_ref[...] + pe_ref[...][None, :, :]


# ----------------------------------------------------------------------------
# Strategy A: lane-dense flatten  x -> (B, D*L), pe -> (1, D*L).
# ----------------------------------------------------------------------------
def _pos_add_flat(x, pe, cap_elems, vmem_limit, sub_mult):
    B, D, L = x.shape
    C = D * L
    itemsize = jnp.dtype(x.dtype).itemsize
    x2 = x.reshape(B, C)
    pe2 = pe.reshape(1, C)

    row_cap = max(sub_mult, cap_elems // _LANE)
    block_b = B if B <= row_cap else _round_down(row_cap, sub_mult)
    block_c = _pick_lane_block(C, max(_LANE, cap_elems // block_b))

    n_c, n_b = _cdiv(C, block_c), _cdiv(B, block_b)
    # Feed both v7x TensorCores when a single block would cover a big tensor.
    if n_c * n_b == 1 and block_c % (2 * _LANE) == 0 and B * C * itemsize >= (1 << 20):
        block_c //= 2
        n_c = 2

    out2 = pl.pallas_call(
        _add_flat_kernel,
        out_shape=jax.ShapeDtypeStruct((B, C), x.dtype),
        grid_spec=pltpu.PrefetchScalarGridSpec(
            num_scalar_prefetch=0,
            grid=(n_c, n_b),          # rows inner -> PE block resident, not re-DMA'd
            in_specs=[
                pl.BlockSpec((block_b, block_c), lambda j, i: (i, j)),
                pl.BlockSpec((1, block_c), lambda j, i: (0, j)),
            ],
            out_specs=pl.BlockSpec((block_b, block_c), lambda j, i: (i, j)),
        ),
        input_output_aliases={0: 0},          # in-place x.add_ semantics
        compiler_params=pltpu.CompilerParams(
            dimension_semantics=("parallel", "parallel"),
            vmem_limit_bytes=vmem_limit,
        ),
    )(x2, pe2)
    return out2.reshape(B, D, L)


# ----------------------------------------------------------------------------
# Strategy B: small-batch path, x stays 3D; blocks (1, D, block_l).
# ----------------------------------------------------------------------------
def _pos_add_3d(x, pe, cap_elems, vmem_limit):
    B, D, L = x.shape
    itemsize = jnp.dtype(x.dtype).itemsize
    block_l = _pick_lane_block(L, max(_LANE, cap_elems // D))

    n_l = _cdiv(L, block_l)
    if n_l * B == 1 and block_l % (2 * _LANE) == 0 and D * L * itemsize >= (1 << 20):
        block_l //= 2
        n_l = 2

    return pl.pallas_call(
        _add_3d_kernel,
        out_shape=jax.ShapeDtypeStruct((B, D, L), x.dtype),
        grid_spec=pltpu.PrefetchScalarGridSpec(
            num_scalar_prefetch=0,
            grid=(n_l, B),            # batch inner -> PE block resident, not re-DMA'd
            in_specs=[
                pl.BlockSpec((1, D, block_l), lambda j, b: (b, 0, j)),
                pl.BlockSpec((D, block_l), lambda j, b: (0, j)),
            ],
            out_specs=pl.BlockSpec((1, D, block_l), lambda j, b: (b, 0, j)),
        ),
        input_output_aliases={0: 0},          # in-place x.add_ semantics
        compiler_params=pltpu.CompilerParams(
            dimension_semantics=("parallel", "parallel"),
            vmem_limit_bytes=vmem_limit,
        ),
    )(x, pe)


# ----------------------------------------------------------------------------
# Public forward.  x's buffer is donated (true in-place, no defensive copy).
# ----------------------------------------------------------------------------
@functools.partial(jax.jit, donate_argnums=(0,))
def _pos_encoder_impl(x, pos_encoding):
    B, D, L = x.shape
    pe = pos_encoding.astype(x.dtype)
    itemsize = jnp.dtype(x.dtype).itemsize
    sub_mult = {4: 8, 2: 16, 1: 32}.get(itemsize, 8)
    cap_elems, vmem_limit = _hw_config(itemsize)
    if B < 8 and L >= _LANE and D >= 8:
        return _pos_add_3d(x, pe, cap_elems, vmem_limit)
    return _pos_add_flat(x, pe, cap_elems, vmem_limit, sub_mult)


def pos_encoder(x: jnp.ndarray, pos_encoding: jnp.ndarray) -> jnp.ndarray:
    """x: (B, D, L); pos_encoding: (D, L). Returns x + pos_encoding (x donated)."""
    return _pos_encoder_impl(x, pos_encoding)


if __name__ == "__main__":
    key = jax.random.PRNGKey(0)

    cases = [
        ((2, 32, 128), jnp.float32),    # small batch, lane-dense L -> 3D path
        ((2, 32, 16), jnp.float32),     # tiny L                    -> flat path
        ((16, 8, 128), jnp.float32),    # batch >= 8                -> flat path
        ((2, 32, 128), jnp.bfloat16),   # bf16 activations          -> 3D path
    ]

    for (B, D, L), dt in cases:
        key, sub = jax.random.split(key)
        x = jax.random.normal(sub, (B, D, L), dtype=jnp.float32).astype(dt)
        pe = make_pos_encoding(D, L)

        # Reference computed BEFORE the call (x is donated by pos_encoder).
        ref = (x.astype(jnp.float32) + pe[None, :, :]).astype(dt)

        out = jax.block_until_ready(pos_encoder(x, pe))

        assert out.shape == (B, D, L)
        tol = 1e-6 if dt == jnp.float32 else 1e-1
        assert jnp.allclose(
            out.astype(jnp.float32), ref.astype(jnp.float32), atol=tol
        ), f"mismatch vs reference at {(B, D, L, dt)}"

    print("KERNEL_OK")
</pallas_src>

<mosaic_0001>
module attributes {stable_mosaic.version = 11 : i64} {
  func.func @_add_3d_kernel(%arg0: i32, %arg1: i32, %arg2: memref<1x32x128xf32, #tpu.memory_space<vmem>>, %arg3: memref<32x128xf32, #tpu.memory_space<vmem>>, %arg4: memref<1x32x128xf32, #tpu.memory_space<vmem>>) attributes {dimension_semantics = [#tpu.dimension_semantics<parallel>, #tpu.dimension_semantics<parallel>], iteration_bounds = array<i64: 1, 2>, scalar_prefetch = 0 : i64, scratch_operands = 0 : i64, tpu.core_type = #tpu.core_type<tc>, window_params = [{transform_indices = @transform_0, window_bounds = array<i64: 1, 32, 128>}, {transform_indices = @transform_1, window_bounds = array<i64: 32, 128>}, {transform_indices = @transform_2, window_bounds = array<i64: 1, 32, 128>}]} {
    %c0 = arith.constant 0 : index
    %c0_0 = arith.constant 0 : index
    %c0_1 = arith.constant 0 : index
    %0 = vector.load %arg2[%c0, %c0_0, %c0_1] : memref<1x32x128xf32, #tpu.memory_space<vmem>>, vector<1x32x128xf32>
    %c0_2 = arith.constant 0 : index
    %c0_3 = arith.constant 0 : index
    %1 = vector.load %arg3[%c0_2, %c0_3] : memref<32x128xf32, #tpu.memory_space<vmem>>, vector<32x128xf32>
    %2 = vector.shape_cast %1 : vector<32x128xf32> to vector<1x32x128xf32>
    %3 = arith.addf %0, %2 : vector<1x32x128xf32>
    %c0_4 = arith.constant 0 : index
    %c0_5 = arith.constant 0 : index
    %c0_6 = arith.constant 0 : index
    %4 = vector.load %arg4[%c0_4, %c0_5, %c0_6] : memref<1x32x128xf32, #tpu.memory_space<vmem>>, vector<1x32x128xf32>
    tpu.vector_store %arg4[%c0_4, %c0_5, %c0_6], %3 {strides = array<i32>} : memref<1x32x128xf32, #tpu.memory_space<vmem>>, vector<1x32x128xf32>,
    return
  }
  func.func @transform_0(%arg0: i32, %arg1: i32) -> (i32, i32, i32) {
    %c0_i32 = arith.constant 0 : i32
    %c0_i32_0 = arith.constant 0 : i32
    return %arg1, %c0_i32, %arg0 : i32, i32, i32
  }
  func.func @transform_1(%arg0: i32, %arg1: i32) -> (i32, i32) {
    %c0_i32 = arith.constant 0 : i32
    %c0_i32_0 = arith.constant 0 : i32
    return %c0_i32, %arg0 : i32, i32
  }
  func.func @transform_2(%arg0: i32, %arg1: i32) -> (i32, i32, i32) {
    %c0_i32 = arith.constant 0 : i32
    %c0_i32_0 = arith.constant 0 : i32
    return %arg1, %c0_i32, %arg0 : i32, i32, i32
  }
}

</mosaic_0001>

<llo_original>
// kernel: _pos_encoder_impl.1
$region0: #{_pos_encoder_impl.1}
  #allocation0 [shape = 'u32[]', space=smem, size = 0x4, offset = 0x4, fixed_abs, tag = 'smem constant byte address 0x4 - core index']
  #allocation1 [shape = 'u32[144,128]{1,0:T(1,128)}', space=vmem, size = 0x12000, scoped, tag = 'internal scratch']
  %s0 = inlined_call_operand.hbm [shape: f32[2,32,128], index: 0, kind: input, shape index: {}, may-alias: {0,2}]
  %s1 = inlined_call_operand.hbm [shape: f32[32,128], index: 1, kind: input, shape index: {}]
  %s2 = inlined_call_operand.hbm [shape: f32[2,32,128], index: 2, kind: output, shape index: {}, may-alias: {0,2}]
  %s3 = sld [smem:[#allocation0]]
  $region49: #{_pos_encoder_impl.1} parent=0
    _
  %s5 = ssub.s32 1, %s3
  %s6 = scalar_select 0, %s5, %s3
  $region1: #{_pos_encoder_impl.1} parent=0
    #allocation2 [shape = 'u8[32768]{0}', space=vmem, size = 0x8000, scoped, tag = 'input window, operand 0']
    #allocation3 [shape = 's32[2]{0}', space=sflag, size = 0x8, scoped, tag = 'scoped memory for _pos_encoder_impl.1']
    #allocation4 [shape = 's32[2]{0}', space=sflag, size = 0x8, scoped, tag = 'scoped memory for _pos_encoder_impl.1']
    #allocation5 [shape = 'u8[16384]{0}', space=vmem, size = 0x4000, scoped, tag = 'input window, operand 1, single buffered']
    #allocation6 [shape = 's32[1]{0}', space=sflag, size = 0x4, scoped, tag = 'scoped memory for _pos_encoder_impl.1']
    #allocation7 [shape = 'u8[32768]{0}', space=vmem, size = 0x8000, scoped, tag = 'output window, operand 0']
    %7 = vsyncpa [#allocation3], 0
    %s8 = scalar_lea.sflag [#allocation3], 1
    %9 = vsyncpa %s8, 0
    %10 = vsyncpa [#allocation6], 0
    %11 = vsyncpa [#allocation4], 0
    %s12 = scalar_lea.sflag [#allocation4], 1
    %13 = vsyncpa %s12, 0
    loop: start=0, step=1, limit=4
    $region2: #{_pos_encoder_impl.1} parent=1 // loop_pre_header
      _
    $region3: #{_pos_encoder_impl.1} parent=1 // loop_header
      %s15 = sphi 0, %s19
      %p16 = scmp.ge.s32.totalorder %s15, 4
      %s22 = sphi 0, %s34
      %s23 = sphi 0, %s30
      %s24 = sphi 0, %s22
      %s25 = sphi 0, %s23
      %s26 = sphi 0, %s24
      %s27 = sphi 0, %s25
      %s39 = sphi 0, %s41
      %s42 = sphi 0, %s39
      %s43 = sphi 0, %s42
      %s59 = sphi 0, %s43
      %s65 = sphi 0, %s67
      %s68 = sphi 0, %s65
      %s69 = sphi 0, %s68
      %s85 = sphi 0, %s69
      %s93 = sphi 0, %s95
      %s96 = sphi 0, %s93
      %s97 = sphi 0, %s96
      %s113 = sphi 0, %s97
    $region4: #{_pos_encoder_impl.1} parent=1 // loop_header_branch
      %18 = sbr.rel (%p16) target = $region8
    $region5: #{_pos_encoder_impl.1} parent=1 // loop_body
      %s20 = ssub.s32 %s15, 1
      %s21 = ssub.s32 %s15, 2
      %s28 = sadd.s32 1, %s23
      %p29 = scmp.ge.s32.totalorder %s28, 2
      %s30 = scalar_select %p29, 0, %s28
      %s31 = sadd.s32 1, %s22
      %s32 = scalar_select %p29, %s31, %s22
      %p33 = scmp.ge.s32.totalorder %s32, 1
      %s34 = scalar_select %p33, 0, %s32
      %s35 = ssub.s32 %s23, %s30
      %s36 = ssub.s32 %s22, %s34
      %s37 = sor.u32 %s35, %s36
      %p38 = scmp.eq.s32.totalorder %s37, 0
      %s40 = sadd.s32 %s39, 1
      %s41 = scalar_select %p38, %s39, %s40
      %p44 = pneg %p38
      %p45 = scmp.eq.s32.totalorder %s15, 1
      %p46 = por %p44, %p45
      %p47 = scmp.ne.s32.totalorder %s39, %s42
      %p48 = scmp.eq.s32.totalorder %s15, 0
      %p49 = por %p47, %p48
      %p50 = scmp.ne.s32.totalorder %s39, %s42
      %p51 = scmp.eq.s32.totalorder %s20, 1
      %p52 = por %p50, %p51
      %p53 = scmp.ne.s32.totalorder %s42, %s43
      %p54 = scmp.eq.s32.totalorder %s20, 0
      %p55 = por %p53, %p54
      %p56 = scmp.ne.s32.totalorder %s42, %s43
      %p57 = scmp.eq.s32.totalorder %s21, 1
      %p58 = por %p56, %p57
      %p60 = scmp.ne.s32.totalorder %s43, %s59
      %p61 = scmp.eq.s32.totalorder %s21, 0
      %p62 = por %p60, %p61
      %s63 = ssub.s32 %s22, %s34
      %p64 = scmp.eq.s32.totalorder %s63, 0
      %s66 = sadd.s32 %s65, 1
      %s67 = scalar_select %p64, %s65, %s66
      %p70 = pneg %p64
      %p71 = scmp.eq.s32.totalorder %s15, 1
      %p72 = por %p70, %p71
      %p73 = scmp.ne.s32.totalorder %s65, %s68
      %p74 = scmp.eq.s32.totalorder %s15, 0
      %p75 = por %p73, %p74
      %p76 = scmp.ne.s32.totalorder %s65, %s68
      %p77 = scmp.eq.s32.totalorder %s20, 1
      %p78 = por %p76, %p77
      %p79 = scmp.ne.s32.totalorder %s68, %s69
      %p80 = scmp.eq.s32.totalorder %s20, 0
      %p81 = por %p79, %p80
      %p82 = scmp.ne.s32.totalorder %s68, %s69
      %p83 = scmp.eq.s32.totalorder %s21, 1
      %p84 = por %p82, %p83
      %p86 = scmp.ne.s32.totalorder %s69, %s85
      %p87 = scmp.eq.s32.totalorder %s21, 0
      %p88 = por %p86, %p87
      %s89 = ssub.s32 %s23, %s30
      %s90 = ssub.s32 %s22, %s34
      %s91 = sor.u32 %s89, %s90
      %p92 = scmp.eq.s32.totalorder %s91, 0
      %s94 = sadd.s32 %s93, 1
      %s95 = scalar_select %p92, %s93, %s94
      %p98 = pneg %p92
      %p99 = scmp.eq.s32.totalorder %s15, 1
      %p100 = por %p98, %p99
      %p101 = scmp.ne.s32.totalorder %s93, %s96
      %p102 = scmp.eq.s32.totalorder %s15, 0
      %p103 = por %p101, %p102
      %p104 = scmp.ne.s32.totalorder %s93, %s96
      %p105 = scmp.eq.s32.totalorder %s20, 1
      %p106 = por %p104, %p105
      %p107 = scmp.ne.s32.totalorder %s96, %s97
      %p108 = scmp.eq.s32.totalorder %s20, 0
      %p109 = por %p107, %p108
      %p110 = scmp.ne.s32.totalorder %s96, %s97
      %p111 = scmp.eq.s32.totalorder %s21, 1
      %p112 = por %p110, %p111
      %p114 = scmp.ne.s32.totalorder %s97, %s113
      %p115 = scmp.eq.s32.totalorder %s21, 0
      %p116 = por %p114, %p115
      %p117 = scmp.le.s32.totalorder 1, %s15
      %p118 = scmp.lt.s32.totalorder %s15, 3
      %p119 = pnand %p117, %p118
      %p120 = pneg %p119
      // Predicated region
      $region9: #{_pos_encoder_impl.1} parent=5 // pred_check
        _
      $region10: #{_pos_encoder_impl.1} parent=5 // pred_check_branch
        %122 = sbr.rel (%p119) target = $region12
      $region11: #{_pos_encoder_impl.1} parent=5 // pred_region
        %s123 = ssub.s32 %s15, 1
        // Predicated region
        $region13: #{_pos_encoder_impl.1} parent=11 // pred_check
          %p124 = pneg %p81
        $region14: #{_pos_encoder_impl.1} parent=11 // pred_check_branch
          %126 = sbr.rel (%p124) target = $region16
        $region15: #{_pos_encoder_impl.1} parent=11 // pred_region
          %s128 = ssub.s32 512, 512
          %129 = vsyncadd [#allocation6], %s128
          %s130 = smul.addr %s24, 128
          %s131 = scalar_lea.hbm %s1, %s130
          %s132 = sshll.u32 [#allocation5], 4
          %s133 = int_to_ptr.vmem [resolvable:$true] %s132
          %138 = dma.hbm_to_vmem [thread:$0]  %s131, 512, %s133, [#allocation6], 128, 128, 8
        $region16: #{_pos_encoder_impl.1} parent=11 // pred_fallthru
          _
      $region12: #{_pos_encoder_impl.1} parent=5 // pred_fallthru
        _
      %p139 = scmp.lt.s32.totalorder %s15, 2
      // Predicated region
      $region17: #{_pos_encoder_impl.1} parent=5 // pred_check
        %p140 = pneg %p139
      $region18: #{_pos_encoder_impl.1} parent=5 // pred_check_branch
        %142 = sbr.rel (%p140) target = $region20
      $region19: #{_pos_encoder_impl.1} parent=5 // pred_region
        // Predicated region
        $region21: #{_pos_encoder_impl.1} parent=19 // pred_check
          %p143 = pneg %p49
        $region22: #{_pos_encoder_impl.1} parent=19 // pred_check_branch
          %145 = sbr.rel (%p143) target = $region24
        $region23: #{_pos_encoder_impl.1} parent=19 // pred_region
          %s146 = sand.u32 %s39, 1
          %s147 = scalar_lea.sflag [#allocation3], %s146
          %s148 = sand.u32 %s39, 1
          %s149 = smul.addr %s148, 32
          %s150 = scalar_lea.vmem [#allocation2], %s149
          %s152 = ssub.s32 512, 512
          %153 = vsyncadd %s147, %s152
          %s154 = smul.addr %s23, 4
          %s155 = sadd.s32 %s22, %s154
          %s156 = smul.addr %s155, 128
          %s157 = scalar_lea.hbm %s0, %s156
          %s158 = sshll.u32 %s150, 4
          %s159 = int_to_ptr.vmem [resolvable:$true] %s158
          %164 = dma.hbm_to_vmem [thread:$0]  %s157, 512, %s159, %s147, 128, 128, 8
        $region24: #{_pos_encoder_impl.1} parent=19 // pred_fallthru
          _
      $region20: #{_pos_encoder_impl.1} parent=5 // pred_fallthru
        _
      %p165 = scmp.le.s32.totalorder 1, %s15
      %p166 = scmp.lt.s32.totalorder %s15, 3
      %p167 = pnand %p165, %p166
      %p168 = pneg %p167
      // Predicated region
      $region25: #{_pos_encoder_impl.1} parent=5 // pred_check
        _
      $region26: #{_pos_encoder_impl.1} parent=5 // pred_check_branch
        %170 = sbr.rel (%p167) target = $region28
      $region27: #{_pos_encoder_impl.1} parent=5 // pred_region
        %s171 = ssub.s32 %s15, 1
        %s172 = sand.u32 %s42, 1
        %s173 = scalar_lea.sflag [#allocation3], %s172
        %s174 = sand.u32 %s42, 1
        %s175 = smul.addr %s174, 32
        %s176 = scalar_lea.vmem [#allocation2], %s175
        // Predicated region
        $region29: #{_pos_encoder_impl.1} parent=27 // pred_check
          %p177 = pneg %p55
        $region30: #{_pos_encoder_impl.1} parent=27 // pred_check_branch
          %179 = sbr.rel (%p177) target = $region32
        $region31: #{_pos_encoder_impl.1} parent=27 // pred_region
          %180 = dma.done %s173, 512
        $region32: #{_pos_encoder_impl.1} parent=27 // pred_fallthru
          _
        // Predicated region
        $region33: #{_pos_encoder_impl.1} parent=27 // pred_check
          %p181 = pneg %p81
        $region34: #{_pos_encoder_impl.1} parent=27 // pred_check_branch
          %183 = sbr.rel (%p181) target = $region36
        $region35: #{_pos_encoder_impl.1} parent=27 // pred_region
          %184 = dma.done [#allocation6], 512
        $region36: #{_pos_encoder_impl.1} parent=27 // pred_fallthru
          _
        %s185 = sand.u32 %s42, 1
        %s186 = scalar_lea.sflag [#allocation3], %s185
        %s187 = sand.u32 %s42, 1
        %s188 = smul.addr %s187, 32
        %s189 = scalar_lea.vmem [#allocation2], %s188
        %p190 = pneg %p55
        %p191 = pneg %p52
        %p192 = pneg %p81
        %p193 = pneg %p78
        %p194 = pneg %p109
        %p195 = pneg %p106
        %s196 = sand.u32 %s96, 1
        %s197 = scalar_lea.sflag [#allocation4], %s196
        %s198 = sand.u32 %s96, 1
        %s199 = smul.addr %s198, 32
        %s200 = scalar_lea.vmem [#allocation7], %s199
        %v201 = vld [vmem:[%s176] sm:$0xff]
        %v202 = vld [vmem:[%s176 + $0x8] sm:$0xff]
        %v203 = vld [vmem:[%s176 + $0x10] sm:$0xff]
        %v204 = vld [vmem:[%s176 + $0x18] sm:$0xff]
        %v205 = vld [vmem:[#allocation5] sm:$0xff]
        %v206 = vld [vmem:[#allocation5 + $0x8] sm:$0xff]
        %v207 = vld [vmem:[#allocation5 + $0x10] sm:$0xff]
        %v208 = vld [vmem:[#allocation5 + $0x18] sm:$0xff]
        %v209 = vadd.f32 %v201, %v205
        %v210 = vadd.f32 %v202, %v206
        %v211 = vadd.f32 %v203, %v207
        %v212 = vadd.f32 %v204, %v208
        %213 = vst [vmem:[%s200] sm:$0xff] %v209
        %214 = vst [vmem:[%s200 + $0x8] sm:$0xff] %v210
        %215 = vst [vmem:[%s200 + $0x10] sm:$0xff] %v211
        %216 = vst [vmem:[%s200 + $0x18] sm:$0xff] %v212
        %s217 = sand.u32 %s96, 1
        %s218 = scalar_lea.sflag [#allocation4], %s217
        %s219 = sand.u32 %s96, 1
        %s220 = smul.addr %s219, 32
        %s221 = scalar_lea.vmem [#allocation7], %s220
        // Predicated region
        $region37: #{_pos_encoder_impl.1} parent=27 // pred_check
          %p222 = pneg %p106
        $region38: #{_pos_encoder_impl.1} parent=27 // pred_check_branch
          %224 = sbr.rel (%p222) target = $region40
        $region39: #{_pos_encoder_impl.1} parent=27 // pred_region
          %s226 = ssub.s32 512, 512
          %227 = vsyncadd %s218, %s226
          %s228 = smul.addr %s25, 4
          %s229 = sadd.s32 %s24, %s228
          %s230 = smul.addr %s229, 128
          %s231 = scalar_lea.hbm %s2, %s230
          %s232 = sshll.u32 %s221, 4
          %s233 = int_to_ptr.vmem [resolvable:$true] %s232
          %238 = dma.vmem_to_hbm [thread:$0]  %s233, 512, %s231, %s218, 128, 128, 8
        $region40: #{_pos_encoder_impl.1} parent=27 // pred_fallthru
          _
      $region28: #{_pos_encoder_impl.1} parent=5 // pred_fallthru
        _
      %p239 = scmp.le.s32.totalorder 2, %s15
      // Predicated region
      $region41: #{_pos_encoder_impl.1} parent=5 // pred_check
        %p240 = pneg %p239
      $region42: #{_pos_encoder_impl.1} parent=5 // pred_check_branch
        %242 = sbr.rel (%p240) target = $region44
      $region43: #{_pos_encoder_impl.1} parent=5 // pred_region
        %s243 = ssub.s32 %s15, 2
        // Predicated region
        $region45: #{_pos_encoder_impl.1} parent=43 // pred_check
          %p244 = pneg %p112
        $region46: #{_pos_encoder_impl.1} parent=43 // pred_check_branch
          %246 = sbr.rel (%p244) target = $region48
        $region47: #{_pos_encoder_impl.1} parent=43 // pred_region
          %s247 = sand.u32 %s97, 1
          %s248 = scalar_lea.sflag [#allocation4], %s247
          %s249 = sand.u32 %s97, 1
          %s250 = smul.addr %s249, 32
          %s251 = scalar_lea.vmem [#allocation7], %s250
          %252 = dma.done %s248, 512
        $region48: #{_pos_encoder_impl.1} parent=43 // pred_fallthru
          _
      $region44: #{_pos_encoder_impl.1} parent=5 // pred_fallthru
        _
    $region6: #{_pos_encoder_impl.1} parent=1 // loop_footer
      %s19 = sadd.s32 1, %s15
    $region7: #{_pos_encoder_impl.1} parent=1 // loop_footer_branch
      %14 = sbr.rel target = $region3
    $region8: #{_pos_encoder_impl.1} parent=1 // loop_exit
      _
    %253 = vsyncpa [#allocation3], 1
    %s254 = scalar_lea.sflag [#allocation3], 1
    %255 = vsyncpa %s254, 1
    %256 = vsyncpa [#allocation6], 1
    %257 = vsyncpa [#allocation4], 1
    %s258 = scalar_lea.sflag [#allocation4], 1
    %259 = vsyncpa %s258, 1

</llo_original>
